<compile_context>
chip_gen: v6e
topology: v6e:2x2x1
jax: 0.10.0
libtpu: 0.0.40
codegen_flags: <defaults>
</compile_context>

<pallas_src>
import functools
import math

import jax
import jax.numpy as jnp
from jax.experimental import pallas as pl
from jax.experimental.pallas import tpu as pltpu


_FAST_PATH_MAX_BYTES = 1 * 1024 * 1024   # fused single-kernel path below this


def _cdiv(a, b):
    return -(-a // b)


def _round_up(v, m):
    return _cdiv(v, m) * m


def _pick_lanes(total):
    """Largest lane width in {512,256,128} dividing `total` (copy-free reshape);
    otherwise fall back to 128 lanes plus a small zero pad (rare)."""
    for lanes in (512, 256, 128):
        if total % lanes == 0:
            return lanes, 0
    return 128, (-total) % 128


def _target_block_bytes():
    # ~2 MiB f32 streaming blocks reach ~85% of HBM roofline on v5e/v6e and keep
    # both passes' double-buffered blocks under v5e's 16 MiB scoped-VMEM default.
    # On v7x (64 MiB VMEM/core, ~3.2 TB/s HBM) use ~4 MiB blocks to amortize the
    # ~0.35 us per-grid-step overhead (still well under the 32 MiB scoped default).
    try:
        if pltpu.get_tpu_info().vmem_capacity_bytes <= 64 * 1024 * 1024:
            return 4 * 1024 * 1024
    except Exception:
        pass
    return 2 * 1024 * 1024


# ----------------------------- kernels ---------------------------------------


def _fused_kernel(ratio_ref, x_ref, o_ref, *, n_elems):
    """Small-input path: x resident in VMEM; stats + affine fused in one kernel."""
    x = x_ref[...].astype(jnp.float32)
    r = ratio_ref[0]                                   # SMEM scalar
    s = jnp.sum(x, keepdims=True)                      # (1, 1)
    sq = jnp.sum(x * x, keepdims=True)                 # (1, 1)
    mean = s * (1.0 / n_elems)
    # NOTE: uncentered variance E[x^2]-mean^2 (consistent with the streaming
    # path); can lose precision when |mean| >> std.  Padded tail (if any) is
    # zeros and contributes nothing; the true element count is used for n.
    var = jnp.maximum(sq * (1.0 / n_elems) - mean * mean, 0.0)
    inv_s = jax.lax.rsqrt(var)     # rsqrt(0)=inf mirrors torch's divide-by-0 std
    a = r * inv_s + (1.0 - r)                          # (1, 1)
    b = (-r) * mean * inv_s                            # (1, 1)
    o_ref[...] = (x * a + b).astype(o_ref.dtype)


def _reduce_kernel(x_ref, psum_ref, psq_ref, acc_ref, sq_ref, *,
                   rows, tile_rows, lanes, nt_inner, ragged):
    """Pass 1: per-core partial sums of x and x*x into fixed (8, lanes) slabs."""
    c = pl.program_id(0)          # "parallel": split across TensorCores on v7x
    i = pl.program_id(1)          # "arbitrary": sequential reduction axis

    @pl.when(i == 0)
    def _init():
        acc_ref[...] = jnp.zeros_like(acc_ref)
        sq_ref[...] = jnp.zeros_like(sq_ref)

    tile_start = (c * nt_inner + i) * tile_rows        # intended global row offset

    def _accumulate(x):
        # (tile_rows, lanes) -> (tile_rows//8, 8, lanes): summing axis 0 is pure
        # vreg+vreg VPU adds (no cross-lane XLU work), so the accumulator stays a
        # fixed 16 KiB slab regardless of how large the streaming tile is.
        x3 = x.reshape(tile_rows // 8, 8, lanes)
        acc_ref[...] += jnp.sum(x3, axis=0)
        sq_ref[...] += jnp.sum(x3 * x3, axis=0)

    if ragged:
        @pl.when(tile_start + tile_rows <= rows)
        def _full_tile():
            _accumulate(x_ref[...].astype(jnp.float32))

        @pl.when(tile_start + tile_rows > rows)
        def _ragged_tile():
            # Last (or duplicated out-of-range) tile: rows past the true end hold
            # undefined data -- zero them before accumulating.
            x = x_ref[...].astype(jnp.float32)
            row = jax.lax.broadcasted_iota(jnp.int32, (tile_rows, lanes), 0)
            x = jnp.where(tile_start + row < rows, x, 0.0)
            _accumulate(x)
    else:
        _accumulate(x_ref[...].astype(jnp.float32))

    @pl.when(i == nt_inner - 1)
    def _writeback():
        psum_ref[0, :, :] = acc_ref[...]
        psq_ref[0, :, :] = sq_ref[...]


def _affine_kernel(ab_ref, x_ref, o_ref):
    """Pass 2: out = x*a + b (a, b precomputed scalars held in SMEM)."""
    a = ab_ref[0]
    b = ab_ref[1]
    o_ref[...] = (x_ref[...].astype(jnp.float32) * a + b).astype(o_ref.dtype)


# ----------------------------- wrapper ----------------------------------------


@jax.jit
def bn_container_forward(x, bn_ratio):
    """out = bn(x)*r + x*(1-r) with global (all-element) mean/std, r = bn_ratio."""
    orig_shape = x.shape
    total = math.prod(orig_shape)
    itemsize = jnp.dtype(x.dtype).itemsize
    r = jnp.asarray(bn_ratio, dtype=jnp.float32)

    lanes, pad = _pick_lanes(total)
    flat = x.reshape(-1)
    if pad:
        # TODO(synk): only reached when numel is not a multiple of 128; this is
        # the one remaining whole-array copy (zero pad + final slice).
        flat = jnp.concatenate([flat, jnp.zeros((pad,), dtype=x.dtype)])
    rows = (total + pad) // lanes
    x2 = flat.reshape(rows, lanes)          # free reshape when pad == 0
    n = float(total)

    if total * itemsize <= _FAST_PATH_MAX_BYTES:
        # ---- fused single-launch path: one HBM read + one write of x --------
        out2 = pl.pallas_call(
            functools.partial(_fused_kernel, n_elems=n),
            out_shape=jax.ShapeDtypeStruct((rows, lanes), x.dtype),
            grid=(1,),
            in_specs=[
                pl.BlockSpec(memory_space=pltpu.MemorySpace.SMEM),   # (1,) ratio
                pl.BlockSpec((rows, lanes), lambda i: (0, 0)),
            ],
            out_specs=pl.BlockSpec((rows, lanes), lambda i: (0, 0)),
        )(r.reshape(1), x2)
    else:
        block_bytes = _target_block_bytes()
        tile_rows = max(8, (block_bytes // (lanes * 4)) // 8 * 8)
        tile_rows = min(tile_rows, _round_up(rows, 8))
        num_tiles = _cdiv(rows, tile_rows)
        nt_inner = _cdiv(num_tiles, 2)      # 2-way split of the reduction axis
        ragged = (2 * nt_inner * tile_rows) != rows

        # ---- pass 1: partial sum / sum-of-squares (megacore-aware) ----------
        psum, psq = pl.pallas_call(
            functools.partial(_reduce_kernel, rows=rows, tile_rows=tile_rows,
                              lanes=lanes, nt_inner=nt_inner, ragged=ragged),
            out_shape=(
                jax.ShapeDtypeStruct((2, 8, lanes), jnp.float32),
                jax.ShapeDtypeStruct((2, 8, lanes), jnp.float32),
            ),
            grid=(2, nt_inner),
            in_specs=[pl.BlockSpec(
                (tile_rows, lanes),
                # Clamp so the duplicate tile of an odd split stays in range;
                # its contribution is masked to zero inside the kernel.
                lambda c, i, nt=nt_inner, last=num_tiles - 1:
                    (jnp.minimum(c * nt + i, last), 0))],
            out_specs=(
                pl.BlockSpec((1, 8, lanes), lambda c, i: (c, 0, 0)),
                pl.BlockSpec((1, 8, lanes), lambda c, i: (c, 0, 0)),
            ),
            scratch_shapes=[pltpu.VMEM((8, lanes), jnp.float32),
                            pltpu.VMEM((8, lanes), jnp.float32)],
            compiler_params=pltpu.CompilerParams(
                dimension_semantics=("parallel", "arbitrary")),
            cost_estimate=pl.CostEstimate(
                flops=3 * total, transcendentals=0,
                bytes_accessed=total * itemsize),
        )(x2)

        # ---- tiny scalar glue: 2 x (8, lanes) partials -> a, b ---------------
        mean = jnp.sum(psum) / n
        # NOTE: uncentered variance; f32 two-level accumulation.  Use Welford /
        # centered moments if inputs can carry offsets with |mean| >> std.
        var = jnp.maximum(jnp.sum(psq) / n - mean * mean, 0.0)
        inv_s = jax.lax.rsqrt(var)   # rsqrt(0)=inf mirrors torch's x/0 std
        a = r * inv_s + (1.0 - r)
        b = -r * mean * inv_s
        ab = jnp.stack([a, b]).astype(jnp.float32)

        # ---- pass 2: out = x*a + b (HBM-bound streaming affine) --------------
        # (pl.Buffered(3) on these specs is a possible v7x tweak -- unmeasured.)
        out2 = pl.pallas_call(
            _affine_kernel,
            out_shape=jax.ShapeDtypeStruct((rows, lanes), x.dtype),
            grid=(num_tiles,),
            in_specs=[
                pl.BlockSpec(memory_space=pltpu.MemorySpace.SMEM),   # (2,) a, b
                pl.BlockSpec((tile_rows, lanes), lambda i: (i, 0)),
            ],
            out_specs=pl.BlockSpec((tile_rows, lanes), lambda i: (i, 0)),
            compiler_params=pltpu.CompilerParams(
                dimension_semantics=("parallel",)),
            cost_estimate=pl.CostEstimate(
                flops=2 * total, transcendentals=0,
                bytes_accessed=2 * total * itemsize),
        )(ab, x2)

    if pad:
        return out2.reshape(-1)[:total].reshape(orig_shape)
    return out2.reshape(orig_shape)


class BNContainer:
    """JAX/Pallas port of BN_Container.  The epoch-based ratio schedule and the
    zero-ratio early exit stay host-side Python, mirroring the PyTorch control
    flow (it uses `.item()` on the ratio)."""

    def __init__(self, max_ratio=1.0, pure_BN_before=100, no_BN_from=1000, *,
                 x_like_range=5.0):
        self.max_ratio = float(max_ratio)
        self.pure_BN_before = pure_BN_before
        self.no_BN_from = no_BN_from
        self.x_like_range = float(x_like_range)
        self.epoch = 0
        self.training = True

    def set_epoch(self, epoch):
        self.epoch = epoch

    def _calc_pure_ratio(self) -> float:
        if self.epoch <= self.pure_BN_before:
            return 1.0
        if self.epoch >= self.no_BN_from:
            return 0.0
        temp = self.x_like_range * (
            (self.epoch - self.pure_BN_before)
            / (self.no_BN_from - self.pure_BN_before) * 2.0 - 1.0)
        return 1.0 - 1.0 / (1.0 + math.exp(-temp))     # 1 - sigmoid(temp)

    def __call__(self, x):
        if not self.training:
            return x
        bn_ratio = self._calc_pure_ratio() * self.max_ratio
        if bn_ratio == 0.0:
            return x
        return bn_container_forward(x, bn_ratio)


def _reference(x, bn_ratio):
    x32 = x.astype(jnp.float32)
    m = jnp.mean(x32)
    s = jnp.sqrt(jnp.mean((x32 - m) ** 2))
    bn = (x32 - m) / s
    return (bn * bn_ratio + x32 * (1.0 - bn_ratio)).astype(x.dtype)


if __name__ == "__main__":
    key = jax.random.PRNGKey(0)
    k1, k2, k3 = jax.random.split(key, 3)

    mod = BNContainer(max_ratio=0.8, pure_BN_before=100, no_BN_from=1000,
                      x_like_range=5.0)

    # --- small NCHW input (fused fast path) ----------------------------------
    x = jax.random.normal(k1, (2, 4, 16, 16), dtype=jnp.float32)

    mod.set_epoch(0)                      # epoch <= pure_BN_before -> r = max_ratio
    out_early = mod(x)
    jax.block_until_ready(out_early)
    assert out_early.shape == x.shape and out_early.dtype == x.dtype
    assert jnp.allclose(out_early, _reference(x, 0.8), atol=1e-5, rtol=1e-5)

    mod.set_epoch(500)                    # mid training -> interpolated ratio
    r_mid = mod._calc_pure_ratio() * mod.max_ratio
    out_mid = mod(x)
    jax.block_until_ready(out_mid)
    assert jnp.allclose(out_mid, _reference(x, r_mid), atol=1e-5, rtol=1e-5)

    mod.set_epoch(2000)                   # epoch >= no_BN_from -> identity
    out_late = mod(x)
    jax.block_until_ready(out_late)
    assert jnp.array_equal(out_late, x)

    # --- larger input exercising the two-pass streaming path (including a
    #     ragged / masked final row-tile) -------------------------------------
    mod.set_epoch(0)
    x_big = jax.random.normal(k2, (3, 4, 256, 256), dtype=jnp.float32)  # 3 MiB
    out_big = mod(x_big)
    jax.block_until_ready(out_big)
    assert jnp.allclose(out_big, _reference(x_big, 0.8), atol=1e-4, rtol=1e-4)

    # --- odd-sized input (pad fallback, numel not a multiple of 128) ---------
    x_odd = jax.random.normal(k3, (3, 5, 7, 11), dtype=jnp.float32)
    out_odd = mod(x_odd)
    jax.block_until_ready(out_odd)
    assert jnp.allclose(out_odd, _reference(x_odd, 0.8), atol=1e-5, rtol=1e-5)

    print("KERNEL_OK")
</pallas_src>

<mosaic_0001>
module attributes {stable_mosaic.version = 11 : i64} {
  func.func @_fused_kernel(%arg0: i32, %arg1: memref<1xf32, #tpu.memory_space<smem>>, %arg2: memref<4x512xf32, #tpu.memory_space<vmem>>, %arg3: memref<4x512xf32, #tpu.memory_space<vmem>>) attributes {dimension_semantics = [#tpu.dimension_semantics<arbitrary>], iteration_bounds = array<i64: 1>, scalar_prefetch = 0 : i64, scratch_operands = 0 : i64, tpu.core_type = #tpu.core_type<tc>, window_params = [{transform_indices = @transform_0, window_bounds = array<i64: 1>}, {pipeline_mode = #tpu.pipeline_mode<synchronous>, transform_indices = @transform_1, window_bounds = array<i64: 4, 512>}, {pipeline_mode = #tpu.pipeline_mode<synchronous>, transform_indices = @transform_2, window_bounds = array<i64: 4, 512>}]} {
    %c0 = arith.constant 0 : index
    %c0_0 = arith.constant 0 : index
    %0 = vector.load %arg2[%c0, %c0_0] : memref<4x512xf32, #tpu.memory_space<vmem>>, vector<4x512xf32>
    %c0_1 = arith.constant 0 : index
    %1 = memref.load %arg1[%c0_1] : memref<1xf32, #tpu.memory_space<smem>>
    %2 = vector.shape_cast %0 : vector<4x512xf32> to vector<1x4x512xf32>
    %cst = arith.constant dense<0.000000e+00> : vector<1xf32>
    %3 = vector.multi_reduction <add>, %2, %cst [1, 2] : vector<1x4x512xf32> to vector<1xf32>
    %4 = vector.shape_cast %3 : vector<1xf32> to vector<1x1x1xf32>
    %5 = vector.extract %4[0, 0, 0] : f32 from vector<1x1x1xf32>
    %6 = vector.broadcast %5 : f32 to vector<1x1xf32>
    %7 = arith.mulf %0, %0 : vector<4x512xf32>
    %8 = vector.shape_cast %7 : vector<4x512xf32> to vector<1x4x512xf32>
    %cst_2 = arith.constant dense<0.000000e+00> : vector<1xf32>
    %9 = vector.multi_reduction <add>, %8, %cst_2 [1, 2] : vector<1x4x512xf32> to vector<1xf32>
    %10 = vector.shape_cast %9 : vector<1xf32> to vector<1x1x1xf32>
    %11 = vector.extract %10[0, 0, 0] : f32 from vector<1x1x1xf32>
    %12 = vector.broadcast %11 : f32 to vector<1x1xf32>
    %cst_3 = arith.constant 4.8828125E-4 : f32
    %13 = vector.broadcast %cst_3 : f32 to vector<1x1xf32>
    %14 = arith.mulf %6, %13 : vector<1x1xf32>
    %cst_4 = arith.constant 4.8828125E-4 : f32
    %15 = vector.broadcast %cst_4 : f32 to vector<1x1xf32>
    %16 = arith.mulf %12, %15 : vector<1x1xf32>
    %17 = arith.mulf %14, %14 : vector<1x1xf32>
    %18 = arith.subf %16, %17 : vector<1x1xf32>
    %cst_5 = arith.constant 0.000000e+00 : f32
    %19 = vector.broadcast %cst_5 : f32 to vector<1x1xf32>
    %20 = arith.maximumf %18, %19 : vector<1x1xf32>
    %21 = math.rsqrt %20 : vector<1x1xf32>
    %22 = vector.broadcast %1 : f32 to vector<1x1xf32>
    %23 = arith.mulf %22, %21 : vector<1x1xf32>
    %cst_6 = arith.constant 1.000000e+00 : f32
    %24 = arith.subf %cst_6, %1 : f32
    %25 = vector.broadcast %24 : f32 to vector<1x1xf32>
    %26 = arith.addf %23, %25 : vector<1x1xf32>
    %cst_7 = arith.constant 0.000000e+00 : f32
    %27 = arith.subf %cst_7, %1 : f32
    %28 = vector.broadcast %27 : f32 to vector<1x1xf32>
    %29 = arith.mulf %28, %14 : vector<1x1xf32>
    %30 = arith.mulf %29, %21 : vector<1x1xf32>
    %31 = vector.broadcast %26 : vector<1x1xf32> to vector<4x512xf32>
    %32 = arith.mulf %0, %31 : vector<4x512xf32>
    %33 = vector.broadcast %30 : vector<1x1xf32> to vector<4x512xf32>
    %34 = arith.addf %32, %33 : vector<4x512xf32>
    %c0_8 = arith.constant 0 : index
    %c0_9 = arith.constant 0 : index
    %35 = vector.load %arg3[%c0_8, %c0_9] : memref<4x512xf32, #tpu.memory_space<vmem>>, vector<4x512xf32>
    tpu.vector_store %arg3[%c0_8, %c0_9], %34 {strides = array<i32>} : memref<4x512xf32, #tpu.memory_space<vmem>>, vector<4x512xf32>,
    return
  }
  func.func @transform_0(%arg0: i32) -> i32 {
    %c0_i32 = arith.constant 0 : i32
    %c0_i32_0 = arith.constant 0 : i32
    return %c0_i32 : i32
  }
  func.func @transform_1(%arg0: i32) -> (i32, i32) {
    %c0_i32 = arith.constant 0 : i32
    %c0_i32_0 = arith.constant 0 : i32
    %c0_i32_1 = arith.constant 0 : i32
    return %c0_i32, %c0_i32_0 : i32, i32
  }
  func.func @transform_2(%arg0: i32) -> (i32, i32) {
    %c0_i32 = arith.constant 0 : i32
    %c0_i32_0 = arith.constant 0 : i32
    %c0_i32_1 = arith.constant 0 : i32
    return %c0_i32, %c0_i32_0 : i32, i32
  }
}

</mosaic_0001>

<llo_original>
// kernel: bn_container_forward.1
$region0: #{bn_container_forward.1}
  #allocation0 [shape = 'u32[]', space=smem, size = 0x4, offset = 0x4, fixed_abs, tag = 'smem constant byte address 0x4 - core index']
  #allocation1 [shape = 'u32[144,128]{1,0:T(1,128)}', space=vmem, size = 0x12000, scoped, tag = 'internal scratch']
  #allocation2 [shape = 'f32[1]{0:T(128)S(6)}', space=smem, size = 0x200, scoped, tag = 'scoped memory for bn_container_forward.1']
  %s0 = inlined_call_operand.<no memory space> [shape: f32[1], index: 0, kind: input, shape index: {}]
  %s1 = inlined_call_operand.vmem [shape: f32[4,512], index: 1, kind: input, shape index: {}]
  %s2 = inlined_call_operand.vmem [shape: f32[4,512], index: 2, kind: output, shape index: {}]
  %s3 = sld [smem:[#allocation0]]
  $region18: #{bn_container_forward.1} parent=0
    _
  %s5 = ssub.s32 1, %s3
  %s6 = scalar_select 0, %s5, %s3
  %7 = sst [smem:[#allocation2]] %s0
  // Predicated region
  $region2: #{bn_container_forward.1} parent=0 // pred_check
    _
  $region3: #{bn_container_forward.1} parent=0 // pred_check_branch
    %9 = sbr.rel (0) target = $region5
  $region4: #{bn_container_forward.1} parent=0 // pred_region
    _
  $region5: #{bn_container_forward.1} parent=0 // pred_fallthru
    _
  // Predicated region
  $region6: #{bn_container_forward.1} parent=0 // pred_check
    _
  $region7: #{bn_container_forward.1} parent=0 // pred_check_branch
    %11 = sbr.rel (0) target = $region9
  $region8: #{bn_container_forward.1} parent=0 // pred_region
    _
  $region9: #{bn_container_forward.1} parent=0 // pred_fallthru
    _
  %v12 = vld [vmem:[%s1] sm:$0xff]
  %v13 = vld [vmem:[%s1 + $0x8] sm:$0xff]
  %s14 = sld [smem:[#allocation2]]
  %v17 = vcombine.high %v12, %v12
  %v18 = vcombine.high %v13, %v13
  %vm21 = vcmask 1043456
  %v22 = vsel %vm21, %v12, 0.0
  %v23 = vsel %vm21, %v17, 0.0
  %v24 = vadd.f32 %v22, %v23
  %v25 = vsel %vm21, %v13, 0.0
  %v26 = vadd.f32 %v24, %v25
  %v27 = vsel %vm21, %v18, 0.0
  %v28 = vadd.f32 %v26, %v27
  %29 = vadd.xlane.f32.xlu0 %v28
  %v30 = vpop.xlane.xlu0 %29
  %v31 = vrot.slane %v30, 4
  %v32 = vadd.f32 %v30, %v31
  %v33 = vrot.slane %v32, 2
  %v34 = vadd.f32 %v32, %v33
  %v35 = vrot.slane %v34, 1
  %v36 = vadd.f32 %v34, %v35
  %s37 = vtos %v36
  %v38 = vstv %s37
  %v39 = vmul.f32 %v12, %v12
  %v40 = vmul.f32 %v13, %v13
  %v43 = vcombine.high %v39, %v39
  %v44 = vcombine.high %v40, %v40
  %v47 = vsel %vm21, %v39, 0.0
  %v48 = vsel %vm21, %v43, 0.0
  %v49 = vadd.f32 %v47, %v48
  %v50 = vsel %vm21, %v40, 0.0
  %v51 = vadd.f32 %v49, %v50
  %v52 = vsel %vm21, %v44, 0.0
  %v53 = vadd.f32 %v51, %v52
  %54 = vadd.xlane.f32.xlu0 %v53
  %v55 = vpop.xlane.xlu0 %54
  %v56 = vrot.slane %v55, 4
  %v57 = vadd.f32 %v55, %v56
  %v58 = vrot.slane %v57, 2
  %v59 = vadd.f32 %v57, %v58
  %v60 = vrot.slane %v59, 1
  %v61 = vadd.f32 %v59, %v60
  %s62 = vtos %v61
  %v63 = vstv %s62
  %v64 = vmul.f32 %v38, 0.00048828125
  %v65 = vmul.f32 %v63, 0.00048828125
  %v66 = vmul.f32 %v64, %v64
  %v67 = vsub.f32 %v65, %v66
  %v68 = vmax.f32 %v67, 0.0
  %v69 = vrsqrt.pop %v68
  %v70 = vstv %s14
  %v71 = vmul.f32 %v70, %v69
  %s72 = ssub.f32 1.0, %s14
  %v73 = vstv %s72
  %v74 = vadd.f32 %v71, %v73
  %s75 = ssub.f32 0.0, %s14
  %v76 = vstv %s75
  %v77 = vmul.f32 %v76, %v64
  %v78 = vmul.f32 %v77, %v69
  %v79 = vmul.f32 %v12, %v74
  %v80 = vmul.f32 %v13, %v74
  %v81 = vadd.f32 %v79, %v78
  %v82 = vadd.f32 %v80, %v78
  %83 = vst [vmem:[%s2] sm:$0xff] %v81
  %84 = vst [vmem:[%s2 + $0x8] sm:$0xff] %v82
  // Predicated region
  $region10: #{bn_container_forward.1} parent=0 // pred_check
    _
  $region11: #{bn_container_forward.1} parent=0 // pred_check_branch
    %86 = sbr.rel (0) target = $region13
  $region12: #{bn_container_forward.1} parent=0 // pred_region
    _
  $region13: #{bn_container_forward.1} parent=0 // pred_fallthru
    _
  // Predicated region
  $region14: #{bn_container_forward.1} parent=0 // pred_check
    _
  $region15: #{bn_container_forward.1} parent=0 // pred_check_branch
    %88 = sbr.rel (0) target = $region17
  $region16: #{bn_container_forward.1} parent=0 // pred_region
    _
  $region17: #{bn_container_forward.1} parent=0 // pred_fallthru
    _

</llo_original>
